<compile_context>
chip_gen: v7x
topology: tpu7x:2x2x1
jax: 0.10.0
libtpu: 0.0.40
codegen_flags: <defaults>
</compile_context>

<pallas_src>
import math

import numpy as np
import jax
import jax.numpy as jnp
from jax.experimental import pallas as pl
from jax.experimental.pallas import tpu as pltpu


def make_positional_encoding_table(d_model: int, max_len: int = 5000) -> jnp.ndarray:
    """Deterministically build the (max_len, d_model) sin/cos table (float32)."""
    pos = jnp.arange(max_len, dtype=jnp.float32)[:, None]                   # (max_len, 1)
    div = jnp.exp(jnp.arange(0, d_model, 2, dtype=jnp.float32)
                  * (-np.log(10000.0) / d_model))                           # (d_model//2,)
    angles = pos * div                                                       # (max_len, d_model//2)
    pe = jnp.zeros((max_len, d_model), dtype=jnp.float32)
    pe = pe.at[:, 0::2].set(jnp.sin(angles))
    pe = pe.at[:, 1::2].set(jnp.cos(angles))
    return pe


def _pe_add_kernel(x_ref, pe_ref, o_ref):
    # x_ref / o_ref: (b_tile, t_rows, lanes) tile; pe_ref: (t_rows, lanes) float32,
    # broadcast over the leading batch-block dim.  Add in f32, cast on store.
    x = x_ref[...].astype(jnp.float32)
    o_ref[...] = (x + pe_ref[...]).astype(o_ref.dtype)


def _fold_layout(S: int, D: int) -> tuple[int, int, int]:
    """Return (s_rows, lanes, s_pad) with (S + s_pad) * D == s_rows * lanes and
    lanes a multiple of 128 whenever the padding overhead is acceptable."""
    if D % 128 == 0:
        return S, D, 0
    k = 128 // math.gcd(D, 128)            # smallest k with (k * D) % 128 == 0
    S_pad = ((S + k - 1) // k) * k
    if S_pad - S <= S:                     # tolerate at most ~2x inflation from padding
        return S_pad // k, k * D, S_pad - S
    # Pathological D (e.g. large prime): keep (S, D); masked lanes beat >2x HBM traffic.
    return S, D, 0


def _sublane_multiple(itemsize: int) -> int:
    # 8 rows/sublane-group for f32, 16 for bf16/f16, 32 for int8/fp8 (packed rows).
    return 8 * max(1, 4 // itemsize)


def _pick_row_tile(s_rows: int, lanes: int, itemsize: int, target_bytes: int) -> int:
    """Row tile: multiple of the packed-sublane factor, divides s_rows, ~target_bytes."""
    sub = _sublane_multiple(itemsize)
    if s_rows % sub != 0:
        return s_rows                      # ragged/tiny: full-extent block (always legal)
    row_bytes = lanes * itemsize
    max_rows = max(sub, (target_bytes // row_bytes) // sub * sub)
    t = min(s_rows, max_rows)
    t -= t % sub
    while t > sub and s_rows % t != 0:
        t -= sub
    return max(t, sub)


def _choose_tiling(B: int, s_rows: int, lanes: int, itemsize: int,
                   target_bytes: int) -> tuple[int, int]:
    """Return (b_tile, t_rows): prefer large contiguous DMAs, keep >= 2 grid steps."""
    sub = _sublane_multiple(itemsize)
    per_batch_bytes = s_rows * lanes * itemsize

    if per_batch_bytes >= target_bytes or B == 1:
        b_tile = 1
        t_rows = _pick_row_tile(s_rows, lanes, itemsize, target_bytes)
    else:
        # Small per-batch payload: block several batch elements per grid step so the
        # fixed per-step overhead does not dominate and the DMAs stay large.
        t_rows = s_rows
        want = max(1, target_bytes // per_batch_bytes)
        b_tile = max(d for d in range(1, B + 1) if B % d == 0 and d <= want)

    n_r = s_rows // t_rows
    n_b = B // b_tile

    # v7x megacore: keep at least 2 parallel grid steps so both TensorCores stream.
    if n_r * n_b < 2:
        if B >= 2:
            b_tile = max(d for d in range(1, B) if B % d == 0)
        elif s_rows % sub == 0 and s_rows >= 2 * sub:
            half = (s_rows // 2) // sub * sub
            while half > sub and s_rows % half != 0:
                half -= sub
            t_rows = max(half, sub)
    return b_tile, t_rows


def positional_encoding_forward(x: jnp.ndarray,
                                pe_table: jnp.ndarray,
                                *,
                                donate_input: bool = False,
                                target_block_bytes: int = 2 * 1024 * 1024) -> jnp.ndarray:
    """x: (B, S, D); pe_table: (max_len, D). Returns x + pe_table[:S] (broadcast over B)."""
    B, S, D = x.shape
    max_len = pe_table.shape[0]
    if S > max_len:
        raise ValueError(f"sequence length {S} exceeds positional table max_len {max_len}")

    itemsize = int(jnp.dtype(x.dtype).itemsize)
    pe_slice = pe_table[:S, :].astype(jnp.float32)       # keep f32; add in f32 in-kernel

    # Lane-dense layout: fold sequence steps into the lane axis when D % 128 != 0.
    s_rows, lanes, s_pad = _fold_layout(S, D)
    if s_pad:
        x_w = jnp.pad(x, ((0, 0), (0, s_pad), (0, 0)))
        pe_w = jnp.pad(pe_slice, ((0, s_pad), (0, 0)))
    else:
        x_w, pe_w = x, pe_slice
    x_f = x_w.reshape(B, s_rows, lanes)
    pe_f = pe_w.reshape(s_rows, lanes)

    b_tile, t_rows = _choose_tiling(B, s_rows, lanes, itemsize, target_block_bytes)
    n_r = s_rows // t_rows
    n_b = B // b_tile

    kwargs = {}
    if donate_input and s_pad == 0:
        # Valid only because x_f is a contiguous-bitcast reshape of x (no pad/transpose).
        # Only pays off if the caller actually donates x (jit donate_argnums) upstream.
        kwargs["input_output_aliases"] = {0: 0}

    # VMEM budget: 2 double-buffered x/out tiles + double-buffered pe tile.
    x_tile_bytes = b_tile * t_rows * lanes * itemsize
    pe_tile_bytes = t_rows * lanes * 4
    vmem_need = 4 * x_tile_bytes + 2 * pe_tile_bytes
    compiler_kwargs = dict(dimension_semantics=("parallel", "parallel"))
    if vmem_need > 28 * 1024 * 1024:          # only raise the scoped limit when needed
        compiler_kwargs["vmem_limit_bytes"] = int(vmem_need + (8 << 20))

    S_tot = S + s_pad
    cost = pl.CostEstimate(
        flops=B * S_tot * D,
        transcendentals=0,
        bytes_accessed=2 * B * S_tot * D * itemsize + S_tot * D * 4,
    )

    out_f = pl.pallas_call(
        _pe_add_kernel,
        out_shape=jax.ShapeDtypeStruct((B, s_rows, lanes), x.dtype),
        grid_spec=pltpu.PrefetchScalarGridSpec(
            num_scalar_prefetch=0,
            # pe block index changes only on the OUTER axis; batch iterates inner,
            # so the resident pe tile is reused (no re-DMA) across all inner steps.
            grid=(n_r, n_b),
            in_specs=[
                pl.BlockSpec((b_tile, t_rows, lanes), lambda r, b: (b, r, 0)),   # x tile
                pl.BlockSpec((t_rows, lanes), lambda r, b: (r, 0)),              # pe tile (reused)
            ],
            out_specs=pl.BlockSpec((b_tile, t_rows, lanes), lambda r, b: (b, r, 0)),
        ),
        compiler_params=pltpu.CompilerParams(**compiler_kwargs),
        cost_estimate=cost,
        **kwargs,
    )(x_f, pe_f)

    out = out_f.reshape(B, S_tot, D)
    if s_pad:
        out = out[:, :S, :]
    return out


if __name__ == "__main__":
    key = jax.random.PRNGKey(0)
    k0, k1, k2, k3 = jax.random.split(key, 4)

    # 1) Primary check: small shapes consistent with the module (batch=2, seq=8, d_model=32).
    B, S, D = 2, 8, 32
    x = jax.random.normal(k0, (B, S, D), dtype=jnp.float32)
    pe_table = make_positional_encoding_table(D, max_len=64)
    out = jax.block_until_ready(positional_encoding_forward(x, pe_table))
    ref = x + pe_table[None, :S, :]
    np.testing.assert_allclose(np.asarray(out), np.asarray(ref), rtol=1e-6, atol=1e-6)

    # 2) Ragged-S check: exercises the lane-dense fold with zero-padding (S=10, fold k=4).
    B2, S2, D2 = 2, 10, 32
    x2 = jax.random.normal(k1, (B2, S2, D2), dtype=jnp.float32)
    out2 = jax.block_until_ready(positional_encoding_forward(x2, pe_table))
    ref2 = x2 + pe_table[None, :S2, :]
    np.testing.assert_allclose(np.asarray(out2), np.asarray(ref2), rtol=1e-6, atol=1e-6)

    # 3) Row-tiling check: small byte target forces a multi-step grid (grid = (4, 2)).
    B3, S3, D3 = 2, 512, 32
    x3 = jax.random.normal(k2, (B3, S3, D3), dtype=jnp.float32)
    pe_table3 = make_positional_encoding_table(D3, max_len=1024)
    out3 = jax.block_until_ready(
        positional_encoding_forward(x3, pe_table3, target_block_bytes=16 * 1024))
    ref3 = x3 + pe_table3[None, :S3, :]
    np.testing.assert_allclose(np.asarray(out3), np.asarray(ref3), rtol=1e-6, atol=1e-6)

    # 4) bf16 check: dtype-aware sublane multiple + batch blocking + f32 add, cast on store.
    B4, S4, D4 = 4, 64, 32
    x4 = jax.random.normal(k3, (B4, S4, D4), dtype=jnp.float32).astype(jnp.bfloat16)
    pe_table4 = make_positional_encoding_table(D4, max_len=128)
    out4 = jax.block_until_ready(positional_encoding_forward(x4, pe_table4))
    ref4 = (x4.astype(jnp.float32) + pe_table4[None, :S4, :]).astype(jnp.bfloat16)
    np.testing.assert_allclose(np.asarray(out4, dtype=np.float32),
                               np.asarray(ref4, dtype=np.float32), rtol=1e-2, atol=1e-2)

    print("KERNEL_OK")
</pallas_src>

<mosaic_0001>
module attributes {stable_mosaic.version = 11 : i64} {
  func.func @_pe_add_kernel(%arg0: i32, %arg1: i32, %arg2: memref<1x2x128xf32, #tpu.memory_space<vmem>>, %arg3: memref<2x128xf32, #tpu.memory_space<vmem>>, %arg4: memref<1x2x128xf32, #tpu.memory_space<vmem>>) attributes {dimension_semantics = [#tpu.dimension_semantics<parallel>, #tpu.dimension_semantics<parallel>], iteration_bounds = array<i64: 1, 2>, scalar_prefetch = 0 : i64, scratch_operands = 0 : i64, tpu.core_type = #tpu.core_type<tc>, window_params = [{transform_indices = @transform_0, window_bounds = array<i64: 1, 2, 128>}, {transform_indices = @transform_1, window_bounds = array<i64: 2, 128>}, {transform_indices = @transform_2, window_bounds = array<i64: 1, 2, 128>}]} {
    %c0 = arith.constant 0 : index
    %c0_0 = arith.constant 0 : index
    %c0_1 = arith.constant 0 : index
    %0 = vector.load %arg2[%c0, %c0_0, %c0_1] : memref<1x2x128xf32, #tpu.memory_space<vmem>>, vector<1x2x128xf32>
    %c0_2 = arith.constant 0 : index
    %c0_3 = arith.constant 0 : index
    %1 = vector.load %arg3[%c0_2, %c0_3] : memref<2x128xf32, #tpu.memory_space<vmem>>, vector<2x128xf32>
    %2 = vector.shape_cast %1 : vector<2x128xf32> to vector<1x2x128xf32>
    %3 = arith.addf %0, %2 : vector<1x2x128xf32>
    %c0_4 = arith.constant 0 : index
    %c0_5 = arith.constant 0 : index
    %c0_6 = arith.constant 0 : index
    %4 = vector.load %arg4[%c0_4, %c0_5, %c0_6] : memref<1x2x128xf32, #tpu.memory_space<vmem>>, vector<1x2x128xf32>
    tpu.vector_store %arg4[%c0_4, %c0_5, %c0_6], %3 {strides = array<i32>} : memref<1x2x128xf32, #tpu.memory_space<vmem>>, vector<1x2x128xf32>,
    return
  }
  func.func @transform_0(%arg0: i32, %arg1: i32) -> (i32, i32, i32) {
    %c0_i32 = arith.constant 0 : i32
    %c0_i32_0 = arith.constant 0 : i32
    return %arg1, %arg0, %c0_i32 : i32, i32, i32
  }
  func.func @transform_1(%arg0: i32, %arg1: i32) -> (i32, i32) {
    %c0_i32 = arith.constant 0 : i32
    %c0_i32_0 = arith.constant 0 : i32
    return %arg0, %c0_i32 : i32, i32
  }
  func.func @transform_2(%arg0: i32, %arg1: i32) -> (i32, i32, i32) {
    %c0_i32 = arith.constant 0 : i32
    %c0_i32_0 = arith.constant 0 : i32
    return %arg1, %arg0, %c0_i32 : i32, i32, i32
  }
}

</mosaic_0001>

<llo_original>
// kernel: tpu_custom_call.1
$region0: #{tpu_custom_call.1}
  #allocation0 [shape = 'u32[]', space=smem, size = 0x4, offset = 0x4, fixed_abs, tag = 'smem constant byte address 0x4 - core index']
  #allocation1 [shape = 'u32[144,128]{1,0:T(1,128)}', space=vmem, size = 0x12000, scoped, tag = 'internal scratch']
  %s0 = inlined_call_operand.hbm [shape: f32[2,2,128], index: 0, kind: input, shape index: {}]
  %s1 = inlined_call_operand.vmem [shape: f32[2,128], index: 1, kind: input, shape index: {}]
  %s2 = inlined_call_operand.hbm [shape: f32[2,2,128], index: 2, kind: output, shape index: {}]
  %s3 = sld [smem:[#allocation0]]
  $region45: #{tpu_custom_call.1} parent=0
    _
  %s5 = ssub.s32 1, %s3
  %s6 = scalar_select 0, %s5, %s3
  $region1: #{tpu_custom_call.1} parent=0
    #allocation2 [shape = 'u8[2048]{0}', space=vmem, size = 0x800, scoped, tag = 'input window, operand 0']
    #allocation3 [shape = 's32[2]{0}', space=sflag, size = 0x8, scoped, tag = 'scoped memory for tpu_custom_call.1']
    #allocation4 [shape = 's32[2]{0}', space=sflag, size = 0x8, scoped, tag = 'scoped memory for tpu_custom_call.1']
    #allocation5 [shape = 'u8[2048]{0}', space=vmem, size = 0x800, scoped, tag = 'output window, operand 0']
    %7 = vsyncpa [#allocation3], 0
    %s8 = scalar_lea.sflag [#allocation3], 1
    %9 = vsyncpa %s8, 0
    %10 = vsyncpa [#allocation4], 0
    %s11 = scalar_lea.sflag [#allocation4], 1
    %12 = vsyncpa %s11, 0
    loop: start=0, step=1, limit=4
    $region2: #{tpu_custom_call.1} parent=1 // loop_pre_header
      _
    $region3: #{tpu_custom_call.1} parent=1 // loop_header
      %s14 = sphi 0, %s18
      %p15 = scmp.ge.s32.totalorder %s14, 4
      %s21 = sphi 0, %s33
      %s22 = sphi 0, %s29
      %s23 = sphi 0, %s21
      %s24 = sphi 0, %s22
      %s25 = sphi 0, %s23
      %s26 = sphi 0, %s24
      %s38 = sphi 0, %s40
      %s41 = sphi 0, %s38
      %s42 = sphi 0, %s41
      %s58 = sphi 0, %s42
      %s64 = sphi 0, %s66
      %s67 = sphi 0, %s64
      %s68 = sphi 0, %s67
      %s84 = sphi 0, %s68
      %s92 = sphi 0, %s94
      %s95 = sphi 0, %s92
      %s96 = sphi 0, %s95
      %s112 = sphi 0, %s96
    $region4: #{tpu_custom_call.1} parent=1 // loop_header_branch
      %17 = sbr.rel (%p15) target = $region8
    $region5: #{tpu_custom_call.1} parent=1 // loop_body
      %s19 = ssub.s32 %s14, 1
      %s20 = ssub.s32 %s14, 2
      %s27 = sadd.s32 1, %s22
      %p28 = scmp.ge.s32.totalorder %s27, 2
      %s29 = scalar_select %p28, 0, %s27
      %s30 = sadd.s32 1, %s21
      %s31 = scalar_select %p28, %s30, %s21
      %p32 = scmp.ge.s32.totalorder %s31, 1
      %s33 = scalar_select %p32, 0, %s31
      %s34 = ssub.s32 %s22, %s29
      %s35 = ssub.s32 %s21, %s33
      %s36 = sor.u32 %s34, %s35
      %p37 = scmp.eq.s32.totalorder %s36, 0
      %s39 = sadd.s32 %s38, 1
      %s40 = scalar_select %p37, %s38, %s39
      %p43 = pneg %p37
      %p44 = scmp.eq.s32.totalorder %s14, 1
      %p45 = por %p43, %p44
      %p46 = scmp.ne.s32.totalorder %s38, %s41
      %p47 = scmp.eq.s32.totalorder %s14, 0
      %p48 = por %p46, %p47
      %p49 = scmp.ne.s32.totalorder %s38, %s41
      %p50 = scmp.eq.s32.totalorder %s19, 1
      %p51 = por %p49, %p50
      %p52 = scmp.ne.s32.totalorder %s41, %s42
      %p53 = scmp.eq.s32.totalorder %s19, 0
      %p54 = por %p52, %p53
      %p55 = scmp.ne.s32.totalorder %s41, %s42
      %p56 = scmp.eq.s32.totalorder %s20, 1
      %p57 = por %p55, %p56
      %p59 = scmp.ne.s32.totalorder %s42, %s58
      %p60 = scmp.eq.s32.totalorder %s20, 0
      %p61 = por %p59, %p60
      %s62 = ssub.s32 %s21, %s33
      %p63 = scmp.eq.s32.totalorder %s62, 0
      %s65 = sadd.s32 %s64, 1
      %s66 = scalar_select %p63, %s64, %s65
      %p69 = pneg %p63
      %p70 = scmp.eq.s32.totalorder %s14, 1
      %p71 = por %p69, %p70
      %p72 = scmp.ne.s32.totalorder %s64, %s67
      %p73 = scmp.eq.s32.totalorder %s14, 0
      %p74 = por %p72, %p73
      %p75 = scmp.ne.s32.totalorder %s64, %s67
      %p76 = scmp.eq.s32.totalorder %s19, 1
      %p77 = por %p75, %p76
      %p78 = scmp.ne.s32.totalorder %s67, %s68
      %p79 = scmp.eq.s32.totalorder %s19, 0
      %p80 = por %p78, %p79
      %p81 = scmp.ne.s32.totalorder %s67, %s68
      %p82 = scmp.eq.s32.totalorder %s20, 1
      %p83 = por %p81, %p82
      %p85 = scmp.ne.s32.totalorder %s68, %s84
      %p86 = scmp.eq.s32.totalorder %s20, 0
      %p87 = por %p85, %p86
      %s88 = ssub.s32 %s22, %s29
      %s89 = ssub.s32 %s21, %s33
      %s90 = sor.u32 %s88, %s89
      %p91 = scmp.eq.s32.totalorder %s90, 0
      %s93 = sadd.s32 %s92, 1
      %s94 = scalar_select %p91, %s92, %s93
      %p97 = pneg %p91
      %p98 = scmp.eq.s32.totalorder %s14, 1
      %p99 = por %p97, %p98
      %p100 = scmp.ne.s32.totalorder %s92, %s95
      %p101 = scmp.eq.s32.totalorder %s14, 0
      %p102 = por %p100, %p101
      %p103 = scmp.ne.s32.totalorder %s92, %s95
      %p104 = scmp.eq.s32.totalorder %s19, 1
      %p105 = por %p103, %p104
      %p106 = scmp.ne.s32.totalorder %s95, %s96
      %p107 = scmp.eq.s32.totalorder %s19, 0
      %p108 = por %p106, %p107
      %p109 = scmp.ne.s32.totalorder %s95, %s96
      %p110 = scmp.eq.s32.totalorder %s20, 1
      %p111 = por %p109, %p110
      %p113 = scmp.ne.s32.totalorder %s96, %s112
      %p114 = scmp.eq.s32.totalorder %s20, 0
      %p115 = por %p113, %p114
      %p116 = scmp.le.s32.totalorder 1, %s14
      %p117 = scmp.lt.s32.totalorder %s14, 3
      %p118 = pnand %p116, %p117
      %p119 = pneg %p118
      // Predicated region
      $region9: #{tpu_custom_call.1} parent=5 // pred_check
        _
      $region10: #{tpu_custom_call.1} parent=5 // pred_check_branch
        %121 = sbr.rel (%p118) target = $region12
      $region11: #{tpu_custom_call.1} parent=5 // pred_region
        %s122 = ssub.s32 %s14, 1
        // Predicated region
        $region13: #{tpu_custom_call.1} parent=11 // pred_check
          %p123 = pneg %p80
        $region14: #{tpu_custom_call.1} parent=11 // pred_check_branch
          %125 = sbr.rel (%p123) target = $region16
        $region15: #{tpu_custom_call.1} parent=11 // pred_region
          %p126 = scmp.lt.s32.totalorder %s23, 0
          %s127 = scalar_select %p126, %s23, 0
          %s128 = smul.addr %s127, 2
          %s129 = scalar_lea.vmem %s1, %s128
        $region16: #{tpu_custom_call.1} parent=11 // pred_fallthru
          _
      $region12: #{tpu_custom_call.1} parent=5 // pred_fallthru
        _
      %p130 = scmp.lt.s32.totalorder %s14, 2
      // Predicated region
      $region17: #{tpu_custom_call.1} parent=5 // pred_check
        %p131 = pneg %p130
      $region18: #{tpu_custom_call.1} parent=5 // pred_check_branch
        %133 = sbr.rel (%p131) target = $region20
      $region19: #{tpu_custom_call.1} parent=5 // pred_region
        // Predicated region
        $region21: #{tpu_custom_call.1} parent=19 // pred_check
          %p134 = pneg %p48
        $region22: #{tpu_custom_call.1} parent=19 // pred_check_branch
          %136 = sbr.rel (%p134) target = $region24
        $region23: #{tpu_custom_call.1} parent=19 // pred_region
          %s137 = sand.u32 %s38, 1
          %s138 = scalar_lea.sflag [#allocation3], %s137
          %s139 = sand.u32 %s38, 1
          %s140 = smul.addr %s139, 2
          %s141 = scalar_lea.vmem [#allocation2], %s140
          %s143 = ssub.s32 32, 32
          %144 = vsyncadd %s138, %s143
          %s145 = sadd.s32 %s21, %s22
          %s146 = smul.addr %s145, 32
          %s147 = scalar_lea.hbm %s0, %s146
          %s149 = sshll.u32 %s141, 4
          %s150 = int_to_ptr.vmem [resolvable:$true] %s149
          %152 = dma.hbm_to_vmem [thread:$0]  %s147, 32, %s150, %s138
        $region24: #{tpu_custom_call.1} parent=19 // pred_fallthru
          _
      $region20: #{tpu_custom_call.1} parent=5 // pred_fallthru
        _
      %p153 = scmp.le.s32.totalorder 1, %s14
      %p154 = scmp.lt.s32.totalorder %s14, 3
      %p155 = pnand %p153, %p154
      %p156 = pneg %p155
      // Predicated region
      $region25: #{tpu_custom_call.1} parent=5 // pred_check
        _
      $region26: #{tpu_custom_call.1} parent=5 // pred_check_branch
        %158 = sbr.rel (%p155) target = $region28
      $region27: #{tpu_custom_call.1} parent=5 // pred_region
        %s159 = ssub.s32 %s14, 1
        %s160 = sand.u32 %s41, 1
        %s161 = scalar_lea.sflag [#allocation3], %s160
        %s162 = sand.u32 %s41, 1
        %s163 = smul.addr %s162, 2
        %s164 = scalar_lea.vmem [#allocation2], %s163
        // Predicated region
        $region29: #{tpu_custom_call.1} parent=27 // pred_check
          %p165 = pneg %p54
        $region30: #{tpu_custom_call.1} parent=27 // pred_check_branch
          %167 = sbr.rel (%p165) target = $region32
        $region31: #{tpu_custom_call.1} parent=27 // pred_region
          %168 = dma.done %s161, 32
        $region32: #{tpu_custom_call.1} parent=27 // pred_fallthru
          _
        %s169 = sand.u32 %s41, 1
        %s170 = scalar_lea.sflag [#allocation3], %s169
        %s171 = sand.u32 %s41, 1
        %s172 = smul.addr %s171, 2
        %s173 = scalar_lea.vmem [#allocation2], %s172
        %p174 = pneg %p54
        %p175 = pneg %p51
        %p176 = scmp.lt.s32.totalorder %s23, 0
        %s177 = scalar_select %p176, %s23, 0
        %s178 = smul.addr %s177, 2
        %s179 = scalar_lea.vmem %s1, %s178
        %p180 = pneg %p80
        %p181 = pneg %p77
        %p182 = pneg %p108
        %p183 = pneg %p105
        %s184 = sand.u32 %s95, 1
        %s185 = scalar_lea.sflag [#allocation4], %s184
        %s186 = sand.u32 %s95, 1
        %s187 = smul.addr %s186, 2
        %s188 = scalar_lea.vmem [#allocation5], %s187
        %p189 = scmp.lt.s32.totalorder %s23, 0
        %s190 = scalar_select %p189, %s23, 0
        %s191 = smul.addr %s190, 2
        %s192 = scalar_lea.vmem %s1, %s191
        %v193 = vld [vmem:[%s164] sm:$0x3]
        %v194 = vld [vmem:[%s192] sm:$0x3]
        %v195 = vadd.f32 %v193, %v194
        %196 = vst [vmem:[%s188] sm:$0x3] %v195
        %s197 = sand.u32 %s95, 1
        %s198 = scalar_lea.sflag [#allocation4], %s197
        %s199 = sand.u32 %s95, 1
        %s200 = smul.addr %s199, 2
        %s201 = scalar_lea.vmem [#allocation5], %s200
        // Predicated region
        $region33: #{tpu_custom_call.1} parent=27 // pred_check
          %p202 = pneg %p105
        $region34: #{tpu_custom_call.1} parent=27 // pred_check_branch
          %204 = sbr.rel (%p202) target = $region36
        $region35: #{tpu_custom_call.1} parent=27 // pred_region
          %s206 = ssub.s32 32, 32
          %207 = vsyncadd %s198, %s206
          %s208 = sadd.s32 %s23, %s24
          %s209 = smul.addr %s208, 32
          %s210 = scalar_lea.hbm %s2, %s209
          %s212 = sshll.u32 %s201, 4
          %s213 = int_to_ptr.vmem [resolvable:$true] %s212
          %215 = dma.vmem_to_hbm [thread:$0]  %s213, 32, %s210, %s198
        $region36: #{tpu_custom_call.1} parent=27 // pred_fallthru
          _
      $region28: #{tpu_custom_call.1} parent=5 // pred_fallthru
        _
      %p216 = scmp.le.s32.totalorder 2, %s14
      // Predicated region
      $region37: #{tpu_custom_call.1} parent=5 // pred_check
        %p217 = pneg %p216
      $region38: #{tpu_custom_call.1} parent=5 // pred_check_branch
        %219 = sbr.rel (%p217) target = $region40
      $region39: #{tpu_custom_call.1} parent=5 // pred_region
        %s220 = ssub.s32 %s14, 2
        // Predicated region
        $region41: #{tpu_custom_call.1} parent=39 // pred_check
          %p221 = pneg %p111
        $region42: #{tpu_custom_call.1} parent=39 // pred_check_branch
          %223 = sbr.rel (%p221) target = $region44
        $region43: #{tpu_custom_call.1} parent=39 // pred_region
          %s224 = sand.u32 %s96, 1
          %s225 = scalar_lea.sflag [#allocation4], %s224
          %s226 = sand.u32 %s96, 1
          %s227 = smul.addr %s226, 2
          %s228 = scalar_lea.vmem [#allocation5], %s227
          %229 = dma.done %s225, 32
        $region44: #{tpu_custom_call.1} parent=39 // pred_fallthru
          _
      $region40: #{tpu_custom_call.1} parent=5 // pred_fallthru
        _
    $region6: #{tpu_custom_call.1} parent=1 // loop_footer
      %s18 = sadd.s32 1, %s14
    $region7: #{tpu_custom_call.1} parent=1 // loop_footer_branch
      %13 = sbr.rel target = $region3
    $region8: #{tpu_custom_call.1} parent=1 // loop_exit
      _
    %230 = vsyncpa [#allocation3], 1
    %s231 = scalar_lea.sflag [#allocation3], 1
    %232 = vsyncpa %s231, 1
    %233 = vsyncpa [#allocation4], 1
    %s234 = scalar_lea.sflag [#allocation4], 1
    %235 = vsyncpa %s234, 1

</llo_original>
